<compile_context>
chip_gen: v5e
topology: v5e:2x2
jax: 0.10.0
libtpu: 0.0.40
codegen_flags: <defaults>
</compile_context>

<pallas_src>
import functools

import jax
import jax.numpy as jnp
from jax.experimental import pallas as pl
from jax.experimental.pallas import tpu as pltpu


def _circpad2d_kernel(x_ref, o_ref, *, pad_l, pad_r, pad_t, pad_b):
    # x_ref: (C_BLK, H, W);  o_ref: (C_BLK, H + pad_t + pad_b, W + pad_l + pad_r)
    # Pure data movement: nine disjoint region stores, no temporaries.
    _, H, W = x_ref.shape

    r_mid = slice(pad_t, pad_t + H)   # interior output rows
    c_mid = slice(pad_l, pad_l + W)   # interior output cols

    # Interior (one big store of the whole input block).
    o_ref[:, r_mid, c_mid] = x_ref[...]

    # Left / right edge strips (width wrap).
    if pad_l > 0:
        o_ref[:, r_mid, :pad_l] = x_ref[:, :, W - pad_l:]
    if pad_r > 0:
        o_ref[:, r_mid, pad_l + W:] = x_ref[:, :, :pad_r]

    # Top strip (height wrap) + its two corners.
    if pad_t > 0:
        top_src = slice(H - pad_t, H)
        o_ref[:, :pad_t, c_mid] = x_ref[:, top_src, :]
        if pad_l > 0:
            o_ref[:, :pad_t, :pad_l] = x_ref[:, top_src, W - pad_l:]
        if pad_r > 0:
            o_ref[:, :pad_t, pad_l + W:] = x_ref[:, top_src, :pad_r]

    # Bottom strip (height wrap) + its two corners.
    if pad_b > 0:
        bot_src = slice(0, pad_b)
        o_ref[:, pad_t + H:, c_mid] = x_ref[:, bot_src, :]
        if pad_l > 0:
            o_ref[:, pad_t + H:, :pad_l] = x_ref[:, bot_src, W - pad_l:]
        if pad_r > 0:
            o_ref[:, pad_t + H:, pad_l + W:] = x_ref[:, bot_src, :pad_r]


def _pick_c_block(N, C, H, W, Ho, Wo, itemsize, vmem_block_budget):
    """Largest divisor of C whose double-buffered in+out blocks fit the budget."""
    per_c = 2 * (H * W + Ho * Wo) * itemsize  # double-buffered in + out, per channel
    max_c = max(1, vmem_block_budget // per_c)
    divisors = [d for d in range(1, C + 1) if C % d == 0]
    fitting = [d for d in divisors if d <= max_c]
    c_blk = max(fitting) if fitting else 1
    # Keep at least 2 total grid steps (when possible) so both v7x TensorCores
    # get work under the "parallel" grid axes.
    if N * (C // c_blk) < 2 and C > 1:
        smaller = [d for d in fitting if C // d >= 2]
        if smaller:
            c_blk = max(smaller)
    return c_blk


def circ_pad2d(x, padding):
    """Pallas equivalent of F.pad(x, padding, mode='circular') for NCHW x.

    padding = (pad_left, pad_right, pad_top, pad_bottom)
    """
    pad_l, pad_r, pad_t, pad_b = padding
    N, C, H, W = x.shape

    if min(pad_l, pad_r, pad_t, pad_b) < 0:
        raise ValueError(f"negative padding not supported: {padding}")
    # Single-wrap only (matches PyTorch circular pad's constraint pad <= dim).
    if pad_l > W or pad_r > W or pad_t > H or pad_b > H:
        raise ValueError(
            "circ_pad2d requires each pad <= the corresponding input dim "
            f"(got padding={padding} for H={H}, W={W})")

    Ho = H + pad_t + pad_b
    Wo = W + pad_l + pad_r
    itemsize = jnp.dtype(x.dtype).itemsize

    # Conservative block budget that fits every generation (v7x: 64 MiB
    # physical VMEM per TensorCore, leave headroom for pipeline bookkeeping).
    VMEM_BLOCK_BUDGET = 24 * 1024 * 1024
    c_blk = _pick_c_block(N, C, H, W, Ho, Wo, itemsize, VMEM_BLOCK_BUDGET)
    n_cblk = C // c_blk

    block_bytes = 2 * c_blk * (H * W + Ho * Wo) * itemsize  # double-buffered
    vmem_limit = int(min(64 * 1024 * 1024,
                         max(32 * 1024 * 1024, 2 * block_bytes)))

    kernel = functools.partial(
        _circpad2d_kernel, pad_l=pad_l, pad_r=pad_r, pad_t=pad_t, pad_b=pad_b)

    return pl.pallas_call(
        kernel,
        out_shape=jax.ShapeDtypeStruct((N, C, Ho, Wo), x.dtype),
        grid_spec=pltpu.PrefetchScalarGridSpec(
            num_scalar_prefetch=0,
            grid=(N, n_cblk),
            # Batch dim is squeezed; a whole C_BLK stack of full (H, W) planes
            # per grid step (full spatial dims satisfy the (8,128) rule).
            in_specs=[
                pl.BlockSpec((None, c_blk, H, W), lambda n, c: (n, c, 0, 0))
            ],
            out_specs=pl.BlockSpec(
                (None, c_blk, Ho, Wo), lambda n, c: (n, c, 0, 0)
            ),
        ),
        compiler_params=pltpu.CompilerParams(
            dimension_semantics=("parallel", "parallel"),
            vmem_limit_bytes=vmem_limit,
        ),
    )(x)


if __name__ == "__main__":
    key = jax.random.PRNGKey(0)
    N, C, H, W = 2, 4, 16, 16
    padding = (2, 3, 1, 2)  # (left, right, top, bottom)

    x = jax.random.normal(key, (N, C, H, W), dtype=jnp.float32)

    out = circ_pad2d(x, padding)
    out = jax.block_until_ready(out)

    # Reference: jnp.pad with mode='wrap' matches torch circular padding.
    pad_l, pad_r, pad_t, pad_b = padding
    ref = jnp.pad(
        x, ((0, 0), (0, 0), (pad_t, pad_b), (pad_l, pad_r)), mode="wrap"
    )

    assert out.shape == ref.shape, (out.shape, ref.shape)
    assert jnp.allclose(out, ref), "mismatch vs reference circular pad"

    # Also exercise a zero-pad side to cover the pl-side `if pad > 0` guards.
    out2 = jax.block_until_ready(circ_pad2d(x, (0, 1, 2, 0)))
    ref2 = jnp.pad(x, ((0, 0), (0, 0), (2, 0), (0, 1)), mode="wrap")
    assert jnp.allclose(out2, ref2), "mismatch vs reference (zero-sided pad)"

    print("KERNEL_OK")
</pallas_src>

<mosaic_0001>
module attributes {stable_mosaic.version = 11 : i64} {
  func.func @_circpad2d_kernel(%arg0: i32, %arg1: i32, %arg2: memref<1x4x16x16xf32, #tpu.memory_space<vmem>>, %arg3: memref<1x4x19x21xf32, #tpu.memory_space<vmem>>) attributes {dimension_semantics = [#tpu.dimension_semantics<parallel>, #tpu.dimension_semantics<parallel>], iteration_bounds = array<i64: 2, 1>, scalar_prefetch = 0 : i64, scratch_operands = 0 : i64, tpu.core_type = #tpu.core_type<tc>, window_params = [{transform_indices = @transform_0, window_bounds = array<i64: 1, 4, 16, 16>}, {transform_indices = @transform_1, window_bounds = array<i64: 1, 4, 19, 21>}]} {
    %c0 = arith.constant 0 : index
    %c0_0 = arith.constant 0 : index
    %c0_1 = arith.constant 0 : index
    %c0_2 = arith.constant 0 : index
    %0 = vector.load %arg2[%c0, %c0_0, %c0_1, %c0_2] : memref<1x4x16x16xf32, #tpu.memory_space<vmem>>, vector<1x4x16x16xf32>
    %1 = vector.shape_cast %0 : vector<1x4x16x16xf32> to vector<4x16x16xf32>
    %c0_3 = arith.constant 0 : index
    %c0_4 = arith.constant 0 : index
    %c1 = arith.constant 1 : index
    %c2 = arith.constant 2 : index
    %2 = vector.load %arg3[%c0_3, %c0_4, %c1, %c2] : memref<1x4x19x21xf32, #tpu.memory_space<vmem>>, vector<1x4x16x16xf32>
    %3 = vector.shape_cast %2 : vector<1x4x16x16xf32> to vector<4x16x16xf32>
    %4 = vector.shape_cast %1 : vector<4x16x16xf32> to vector<1x4x16x16xf32>
    tpu.vector_store %arg3[%c0_3, %c0_4, %c1, %c2], %4 {strides = array<i32>} : memref<1x4x19x21xf32, #tpu.memory_space<vmem>>, vector<1x4x16x16xf32>,
    %c0_5 = arith.constant 0 : index
    %c0_6 = arith.constant 0 : index
    %c0_7 = arith.constant 0 : index
    %c14 = arith.constant 14 : index
    %5 = vector.load %arg2[%c0_5, %c0_6, %c0_7, %c14] : memref<1x4x16x16xf32, #tpu.memory_space<vmem>>, vector<1x4x16x2xf32>
    %6 = vector.shape_cast %5 : vector<1x4x16x2xf32> to vector<4x16x2xf32>
    %c0_8 = arith.constant 0 : index
    %c0_9 = arith.constant 0 : index
    %c1_10 = arith.constant 1 : index
    %c0_11 = arith.constant 0 : index
    %7 = vector.load %arg3[%c0_8, %c0_9, %c1_10, %c0_11] : memref<1x4x19x21xf32, #tpu.memory_space<vmem>>, vector<1x4x16x2xf32>
    %8 = vector.shape_cast %7 : vector<1x4x16x2xf32> to vector<4x16x2xf32>
    %9 = vector.shape_cast %6 : vector<4x16x2xf32> to vector<1x4x16x2xf32>
    tpu.vector_store %arg3[%c0_8, %c0_9, %c1_10, %c0_11], %9 {strides = array<i32>} : memref<1x4x19x21xf32, #tpu.memory_space<vmem>>, vector<1x4x16x2xf32>,
    %c0_12 = arith.constant 0 : index
    %c0_13 = arith.constant 0 : index
    %c0_14 = arith.constant 0 : index
    %c0_15 = arith.constant 0 : index
    %10 = vector.load %arg2[%c0_12, %c0_13, %c0_14, %c0_15] : memref<1x4x16x16xf32, #tpu.memory_space<vmem>>, vector<1x4x16x3xf32>
    %11 = vector.shape_cast %10 : vector<1x4x16x3xf32> to vector<4x16x3xf32>
    %c0_16 = arith.constant 0 : index
    %c0_17 = arith.constant 0 : index
    %c1_18 = arith.constant 1 : index
    %c18 = arith.constant 18 : index
    %12 = vector.load %arg3[%c0_16, %c0_17, %c1_18, %c18] : memref<1x4x19x21xf32, #tpu.memory_space<vmem>>, vector<1x4x16x3xf32>
    %13 = vector.shape_cast %12 : vector<1x4x16x3xf32> to vector<4x16x3xf32>
    %14 = vector.shape_cast %11 : vector<4x16x3xf32> to vector<1x4x16x3xf32>
    tpu.vector_store %arg3[%c0_16, %c0_17, %c1_18, %c18], %14 {strides = array<i32>} : memref<1x4x19x21xf32, #tpu.memory_space<vmem>>, vector<1x4x16x3xf32>,
    %c0_19 = arith.constant 0 : index
    %c0_20 = arith.constant 0 : index
    %c15 = arith.constant 15 : index
    %c0_21 = arith.constant 0 : index
    %15 = vector.load %arg2[%c0_19, %c0_20, %c15, %c0_21] : memref<1x4x16x16xf32, #tpu.memory_space<vmem>>, vector<1x4x1x16xf32>
    %16 = vector.shape_cast %15 : vector<1x4x1x16xf32> to vector<4x1x16xf32>
    %c0_22 = arith.constant 0 : index
    %c0_23 = arith.constant 0 : index
    %c0_24 = arith.constant 0 : index
    %c2_25 = arith.constant 2 : index
    %17 = vector.load %arg3[%c0_22, %c0_23, %c0_24, %c2_25] : memref<1x4x19x21xf32, #tpu.memory_space<vmem>>, vector<1x4x1x16xf32>
    %18 = vector.shape_cast %17 : vector<1x4x1x16xf32> to vector<4x1x16xf32>
    %19 = vector.shape_cast %16 : vector<4x1x16xf32> to vector<1x4x1x16xf32>
    tpu.vector_store %arg3[%c0_22, %c0_23, %c0_24, %c2_25], %19 {strides = array<i32>} : memref<1x4x19x21xf32, #tpu.memory_space<vmem>>, vector<1x4x1x16xf32>,
    %c0_26 = arith.constant 0 : index
    %c0_27 = arith.constant 0 : index
    %c15_28 = arith.constant 15 : index
    %c14_29 = arith.constant 14 : index
    %20 = vector.load %arg2[%c0_26, %c0_27, %c15_28, %c14_29] : memref<1x4x16x16xf32, #tpu.memory_space<vmem>>, vector<1x4x1x2xf32>
    %21 = vector.shape_cast %20 : vector<1x4x1x2xf32> to vector<4x1x2xf32>
    %c0_30 = arith.constant 0 : index
    %c0_31 = arith.constant 0 : index
    %c0_32 = arith.constant 0 : index
    %c0_33 = arith.constant 0 : index
    %22 = vector.load %arg3[%c0_30, %c0_31, %c0_32, %c0_33] : memref<1x4x19x21xf32, #tpu.memory_space<vmem>>, vector<1x4x1x2xf32>
    %23 = vector.shape_cast %22 : vector<1x4x1x2xf32> to vector<4x1x2xf32>
    %24 = vector.shape_cast %21 : vector<4x1x2xf32> to vector<1x4x1x2xf32>
    tpu.vector_store %arg3[%c0_30, %c0_31, %c0_32, %c0_33], %24 {strides = array<i32>} : memref<1x4x19x21xf32, #tpu.memory_space<vmem>>, vector<1x4x1x2xf32>,
    %c0_34 = arith.constant 0 : index
    %c0_35 = arith.constant 0 : index
    %c15_36 = arith.constant 15 : index
    %c0_37 = arith.constant 0 : index
    %25 = vector.load %arg2[%c0_34, %c0_35, %c15_36, %c0_37] : memref<1x4x16x16xf32, #tpu.memory_space<vmem>>, vector<1x4x1x3xf32>
    %26 = vector.shape_cast %25 : vector<1x4x1x3xf32> to vector<4x1x3xf32>
    %c0_38 = arith.constant 0 : index
    %c0_39 = arith.constant 0 : index
    %c0_40 = arith.constant 0 : index
    %c18_41 = arith.constant 18 : index
    %27 = vector.load %arg3[%c0_38, %c0_39, %c0_40, %c18_41] : memref<1x4x19x21xf32, #tpu.memory_space<vmem>>, vector<1x4x1x3xf32>
    %28 = vector.shape_cast %27 : vector<1x4x1x3xf32> to vector<4x1x3xf32>
    %29 = vector.shape_cast %26 : vector<4x1x3xf32> to vector<1x4x1x3xf32>
    tpu.vector_store %arg3[%c0_38, %c0_39, %c0_40, %c18_41], %29 {strides = array<i32>} : memref<1x4x19x21xf32, #tpu.memory_space<vmem>>, vector<1x4x1x3xf32>,
    %c0_42 = arith.constant 0 : index
    %c0_43 = arith.constant 0 : index
    %c0_44 = arith.constant 0 : index
    %c0_45 = arith.constant 0 : index
    %30 = vector.load %arg2[%c0_42, %c0_43, %c0_44, %c0_45] : memref<1x4x16x16xf32, #tpu.memory_space<vmem>>, vector<1x4x2x16xf32>
    %31 = vector.shape_cast %30 : vector<1x4x2x16xf32> to vector<4x2x16xf32>
    %c0_46 = arith.constant 0 : index
    %c0_47 = arith.constant 0 : index
    %c17 = arith.constant 17 : index
    %c2_48 = arith.constant 2 : index
    %32 = vector.load %arg3[%c0_46, %c0_47, %c17, %c2_48] : memref<1x4x19x21xf32, #tpu.memory_space<vmem>>, vector<1x4x2x16xf32>
    %33 = vector.shape_cast %32 : vector<1x4x2x16xf32> to vector<4x2x16xf32>
    %34 = vector.shape_cast %31 : vector<4x2x16xf32> to vector<1x4x2x16xf32>
    tpu.vector_store %arg3[%c0_46, %c0_47, %c17, %c2_48], %34 {strides = array<i32>} : memref<1x4x19x21xf32, #tpu.memory_space<vmem>>, vector<1x4x2x16xf32>,
    %c0_49 = arith.constant 0 : index
    %c0_50 = arith.constant 0 : index
    %c0_51 = arith.constant 0 : index
    %c14_52 = arith.constant 14 : index
    %35 = vector.load %arg2[%c0_49, %c0_50, %c0_51, %c14_52] : memref<1x4x16x16xf32, #tpu.memory_space<vmem>>, vector<1x4x2x2xf32>
    %36 = vector.shape_cast %35 : vector<1x4x2x2xf32> to vector<4x2x2xf32>
    %c0_53 = arith.constant 0 : index
    %c0_54 = arith.constant 0 : index
    %c17_55 = arith.constant 17 : index
    %c0_56 = arith.constant 0 : index
    %37 = vector.load %arg3[%c0_53, %c0_54, %c17_55, %c0_56] : memref<1x4x19x21xf32, #tpu.memory_space<vmem>>, vector<1x4x2x2xf32>
    %38 = vector.shape_cast %37 : vector<1x4x2x2xf32> to vector<4x2x2xf32>
    %39 = vector.shape_cast %36 : vector<4x2x2xf32> to vector<1x4x2x2xf32>
    tpu.vector_store %arg3[%c0_53, %c0_54, %c17_55, %c0_56], %39 {strides = array<i32>} : memref<1x4x19x21xf32, #tpu.memory_space<vmem>>, vector<1x4x2x2xf32>,
    %c0_57 = arith.constant 0 : index
    %c0_58 = arith.constant 0 : index
    %c0_59 = arith.constant 0 : index
    %c0_60 = arith.constant 0 : index
    %40 = vector.load %arg2[%c0_57, %c0_58, %c0_59, %c0_60] : memref<1x4x16x16xf32, #tpu.memory_space<vmem>>, vector<1x4x2x3xf32>
    %41 = vector.shape_cast %40 : vector<1x4x2x3xf32> to vector<4x2x3xf32>
    %c0_61 = arith.constant 0 : index
    %c0_62 = arith.constant 0 : index
    %c17_63 = arith.constant 17 : index
    %c18_64 = arith.constant 18 : index
    %42 = vector.load %arg3[%c0_61, %c0_62, %c17_63, %c18_64] : memref<1x4x19x21xf32, #tpu.memory_space<vmem>>, vector<1x4x2x3xf32>
    %43 = vector.shape_cast %42 : vector<1x4x2x3xf32> to vector<4x2x3xf32>
    %44 = vector.shape_cast %41 : vector<4x2x3xf32> to vector<1x4x2x3xf32>
    tpu.vector_store %arg3[%c0_61, %c0_62, %c17_63, %c18_64], %44 {strides = array<i32>} : memref<1x4x19x21xf32, #tpu.memory_space<vmem>>, vector<1x4x2x3xf32>,
    return
  }
  func.func @transform_0(%arg0: i32, %arg1: i32) -> (i32, i32, i32, i32) {
    %c0_i32 = arith.constant 0 : i32
    %c0_i32_0 = arith.constant 0 : i32
    %c0_i32_1 = arith.constant 0 : i32
    return %arg0, %arg1, %c0_i32, %c0_i32_0 : i32, i32, i32, i32
  }
  func.func @transform_1(%arg0: i32, %arg1: i32) -> (i32, i32, i32, i32) {
    %c0_i32 = arith.constant 0 : i32
    %c0_i32_0 = arith.constant 0 : i32
    %c0_i32_1 = arith.constant 0 : i32
    return %arg0, %arg1, %c0_i32, %c0_i32_0 : i32, i32, i32, i32
  }
}

</mosaic_0001>

<llo_original>
// kernel: tpu_custom_call.1
$region0: #{tpu_custom_call.1}
  #allocation0 [shape = 'u32[]', space=smem, size = 0x4, offset = 0x4, fixed_abs, tag = 'smem constant byte address 0x4 - core index']
  #allocation1 [shape = 'u32[72,128]{1,0:T(1,128)}', space=vmem, size = 0x9000, scoped, tag = 'internal scratch']
  %s0 = inlined_call_operand.hbm [shape: f32[2,4,16,16], index: 0, kind: input, shape index: {}]
  %s1 = inlined_call_operand.vmem [shape: f32[2,4,19,21], index: 1, kind: output, shape index: {}]
  %s2 = sld [smem:[#allocation0]]
  $region41: #{tpu_custom_call.1} parent=0
    _
  %s4 = ssub.s32 1, %s2
  %s5 = scalar_select 0, %s4, %s2
  $region1: #{tpu_custom_call.1} parent=0
    #allocation2 [shape = 'u8[65536]{0}', space=vmem, size = 0x10000, scoped, tag = 'input window, operand 0']
    #allocation3 [shape = 's32[2]{0}', space=sflag, size = 0x8, scoped, tag = 'scoped memory for tpu_custom_call.1']
    %6 = vsyncpa [#allocation3], 0
    %s7 = scalar_lea.sflag [#allocation3], 1
    %8 = vsyncpa %s7, 0
    loop: start=0, step=1, limit=4
    $region2: #{tpu_custom_call.1} parent=1 // loop_pre_header
      _
    $region3: #{tpu_custom_call.1} parent=1 // loop_header
      %s10 = sphi 0, %s14
      %p11 = scmp.ge.s32.totalorder %s10, 4
      %s17 = sphi 0, %s29
      %s18 = sphi 0, %s25
      %s19 = sphi 0, %s17
      %s20 = sphi 0, %s18
      %s21 = sphi 0, %s19
      %s22 = sphi 0, %s20
      %s34 = sphi 0, %s36
      %s37 = sphi 0, %s34
      %s38 = sphi 0, %s37
      %s54 = sphi 0, %s38
      %s62 = sphi 0, %s64
      %s65 = sphi 0, %s62
      %s66 = sphi 0, %s65
      %s82 = sphi 0, %s66
    $region4: #{tpu_custom_call.1} parent=1 // loop_header_branch
      %13 = sbr.rel (%p11) target = $region8
    $region5: #{tpu_custom_call.1} parent=1 // loop_body
      %s15 = ssub.s32 %s10, 1
      %s16 = ssub.s32 %s10, 2
      %s23 = sadd.s32 1, %s18
      %p24 = scmp.ge.s32.totalorder %s23, 1
      %s25 = scalar_select %p24, 0, %s23
      %s26 = sadd.s32 1, %s17
      %s27 = scalar_select %p24, %s26, %s17
      %p28 = scmp.ge.s32.totalorder %s27, 2
      %s29 = scalar_select %p28, 0, %s27
      %s30 = ssub.s32 %s17, %s29
      %s31 = ssub.s32 %s18, %s25
      %s32 = sor.u32 %s30, %s31
      %p33 = scmp.eq.s32.totalorder %s32, 0
      %s35 = sadd.s32 %s34, 1
      %s36 = scalar_select %p33, %s34, %s35
      %p39 = pneg %p33
      %p40 = scmp.eq.s32.totalorder %s10, 1
      %p41 = por %p39, %p40
      %p42 = scmp.ne.s32.totalorder %s34, %s37
      %p43 = scmp.eq.s32.totalorder %s10, 0
      %p44 = por %p42, %p43
      %p45 = scmp.ne.s32.totalorder %s34, %s37
      %p46 = scmp.eq.s32.totalorder %s15, 1
      %p47 = por %p45, %p46
      %p48 = scmp.ne.s32.totalorder %s37, %s38
      %p49 = scmp.eq.s32.totalorder %s15, 0
      %p50 = por %p48, %p49
      %p51 = scmp.ne.s32.totalorder %s37, %s38
      %p52 = scmp.eq.s32.totalorder %s16, 1
      %p53 = por %p51, %p52
      %p55 = scmp.ne.s32.totalorder %s38, %s54
      %p56 = scmp.eq.s32.totalorder %s16, 0
      %p57 = por %p55, %p56
      %s58 = ssub.s32 %s17, %s29
      %s59 = ssub.s32 %s18, %s25
      %s60 = sor.u32 %s58, %s59
      %p61 = scmp.eq.s32.totalorder %s60, 0
      %s63 = sadd.s32 %s62, 1
      %s64 = scalar_select %p61, %s62, %s63
      %p67 = pneg %p61
      %p68 = scmp.eq.s32.totalorder %s10, 1
      %p69 = por %p67, %p68
      %p70 = scmp.ne.s32.totalorder %s62, %s65
      %p71 = scmp.eq.s32.totalorder %s10, 0
      %p72 = por %p70, %p71
      %p73 = scmp.ne.s32.totalorder %s62, %s65
      %p74 = scmp.eq.s32.totalorder %s15, 1
      %p75 = por %p73, %p74
      %p76 = scmp.ne.s32.totalorder %s65, %s66
      %p77 = scmp.eq.s32.totalorder %s15, 0
      %p78 = por %p76, %p77
      %p79 = scmp.ne.s32.totalorder %s65, %s66
      %p80 = scmp.eq.s32.totalorder %s16, 1
      %p81 = por %p79, %p80
      %p83 = scmp.ne.s32.totalorder %s66, %s82
      %p84 = scmp.eq.s32.totalorder %s16, 0
      %p85 = por %p83, %p84
      %p86 = scmp.le.s32.totalorder 1, %s10
      %p87 = scmp.lt.s32.totalorder %s10, 3
      %p88 = pnand %p86, %p87
      %p89 = pneg %p88
      // Predicated region
      $region9: #{tpu_custom_call.1} parent=5 // pred_check
        _
      $region10: #{tpu_custom_call.1} parent=5 // pred_check_branch
        %91 = sbr.rel (%p88) target = $region12
      $region11: #{tpu_custom_call.1} parent=5 // pred_region
        %s92 = ssub.s32 %s10, 1
      $region12: #{tpu_custom_call.1} parent=5 // pred_fallthru
        _
      %p93 = scmp.lt.s32.totalorder %s10, 2
      // Predicated region
      $region13: #{tpu_custom_call.1} parent=5 // pred_check
        %p94 = pneg %p93
      $region14: #{tpu_custom_call.1} parent=5 // pred_check_branch
        %96 = sbr.rel (%p94) target = $region16
      $region15: #{tpu_custom_call.1} parent=5 // pred_region
        // Predicated region
        $region17: #{tpu_custom_call.1} parent=15 // pred_check
          %p97 = pneg %p44
        $region18: #{tpu_custom_call.1} parent=15 // pred_check_branch
          %99 = sbr.rel (%p97) target = $region20
        $region19: #{tpu_custom_call.1} parent=15 // pred_region
          %s100 = sand.u32 %s34, 1
          %s101 = scalar_lea.sflag [#allocation3], %s100
          %s102 = sand.u32 %s34, 1
          %s103 = smul.addr %s102, 64
          %s104 = scalar_lea.vmem [#allocation2], %s103
          %s105 = smul.u32 4, %s18
          %107 = vsyncadd %s101, 0
          %s108 = smul.addr %s105, 2
          %s109 = smul.addr %s17, 8
          %s110 = sadd.s32 %s108, %s109
          %s111 = smul.addr %s110, 8
          %s112 = scalar_lea.hbm %s0, %s111
          %s113 = sshll.u32 %s112, 4
          %s114 = int_to_ptr.hbm [resolvable:$true] %s113
          %s115 = sshll.u32 %s104, 4
          %s116 = int_to_ptr.vmem [resolvable:$true] %s115
          %121 = dma.hbm_to_vmem [thread:$0]  %s114, 1024, %s116, %s101, 128, 128, 8
        $region20: #{tpu_custom_call.1} parent=15 // pred_fallthru
          _
      $region16: #{tpu_custom_call.1} parent=5 // pred_fallthru
        _
      %p122 = scmp.le.s32.totalorder 1, %s10
      %p123 = scmp.lt.s32.totalorder %s10, 3
      %p124 = pnand %p122, %p123
      %p125 = pneg %p124
      // Predicated region
      $region21: #{tpu_custom_call.1} parent=5 // pred_check
        _
      $region22: #{tpu_custom_call.1} parent=5 // pred_check_branch
        %127 = sbr.rel (%p124) target = $region24
      $region23: #{tpu_custom_call.1} parent=5 // pred_region
        %s128 = ssub.s32 %s10, 1
        %s129 = sand.u32 %s37, 1
        %s130 = scalar_lea.sflag [#allocation3], %s129
        %s131 = sand.u32 %s37, 1
        %s132 = smul.addr %s131, 64
        %s133 = scalar_lea.vmem [#allocation2], %s132
        // Predicated region
        $region25: #{tpu_custom_call.1} parent=23 // pred_check
          %p134 = pneg %p50
        $region26: #{tpu_custom_call.1} parent=23 // pred_check_branch
          %136 = sbr.rel (%p134) target = $region28
        $region27: #{tpu_custom_call.1} parent=23 // pred_region
          %138 = dma.done %s130, 1024
        $region28: #{tpu_custom_call.1} parent=23 // pred_fallthru
          _
        %s139 = sand.u32 %s37, 1
        %s140 = scalar_lea.sflag [#allocation3], %s139
        %s141 = sand.u32 %s37, 1
        %s142 = smul.addr %s141, 64
        %s143 = scalar_lea.vmem [#allocation2], %s142
        %p144 = pneg %p50
        %p145 = pneg %p47
        %p146 = pneg %p78
        %p147 = pneg %p75
        %s148 = smul.u32 4, %s20
        %p149 = scmp.lt.s32.totalorder %s19, 1
        %s150 = scalar_select %p149, %s19, 1
        %p151 = scmp.lt.s32.totalorder %s148, 3
        %s152 = scalar_select %p151, %s148, 3
        %s153 = smul.addr %s152, 3
        %s154 = smul.addr %s150, 12
        %s155 = sadd.s32 %s153, %s154
        %s156 = smul.addr %s155, 8
        %s157 = scalar_lea.vmem %s1, %s156
        %s158 = smul.u32 4, %s20
        %s159 = smul.u32 4, %s20
        %p160 = scmp.lt.s32.totalorder %s19, 1
        %s161 = scalar_select %p160, %s19, 1
        %p162 = scmp.lt.s32.totalorder %s159, 3
        %s163 = scalar_select %p162, %s159, 3
        %s164 = smul.addr %s163, 3
        %s165 = smul.addr %s161, 12
        %s166 = sadd.s32 %s164, %s165
        %s167 = smul.addr %s166, 8
        %s168 = scalar_lea.vmem %s1, %s167
        %s169 = smul.u32 4, %s20
        %v170 = vld [vmem:[%s133] sm:$0xff]
        %v171 = vld [vmem:[%s133 + $0x8] sm:$0xff]
        %v172 = vld [vmem:[%s133 + $0x10] sm:$0xff]
        %v173 = vld [vmem:[%s133 + $0x18] sm:$0xff]
        %v174 = vld [vmem:[%s133 + $0x20] sm:$0xff]
        %v175 = vld [vmem:[%s133 + $0x28] sm:$0xff]
        %v176 = vld [vmem:[%s133 + $0x30] sm:$0xff]
        %v177 = vld [vmem:[%s133 + $0x38] sm:$0xff]
        %186 = vrot.lane.b32.xlu0 %v170, 2
        %v187 = vpop.permute.xlu0 %186
        %188 = vrot.lane.b32.xlu0 %v171, 2
        %v189 = vpop.permute.xlu0 %188
        %190 = vrot.lane.b32.xlu0 %v172, 2
        %v191 = vpop.permute.xlu0 %190
        %192 = vrot.lane.b32.xlu0 %v173, 2
        %v193 = vpop.permute.xlu0 %192
        %194 = vrot.lane.b32.xlu0 %v174, 2
        %v195 = vpop.permute.xlu0 %194
        %196 = vrot.lane.b32.xlu0 %v175, 2
        %v197 = vpop.permute.xlu0 %196
        %198 = vrot.lane.b32.xlu0 %v176, 2
        %v199 = vpop.permute.xlu0 %198
        %200 = vrot.lane.b32.xlu0 %v177, 2
        %v201 = vpop.permute.xlu0 %200
        %vm210 = vcmask 146448
        %211 = vst.msk [vmem:[%s168 + $0x1] sm:$0xff] %vm210, %v187
        %212 = vst.msk [vmem:[%s168 + $0x9] sm:$0xff] %vm210, %v189
        %213 = vst.msk [vmem:[%s168 + $0x19] sm:$0xff] %vm210, %v191
        %214 = vst.msk [vmem:[%s168 + $0x21] sm:$0xff] %vm210, %v193
        %215 = vst.msk [vmem:[%s168 + $0x31] sm:$0xff] %vm210, %v195
        %216 = vst.msk [vmem:[%s168 + $0x39] sm:$0xff] %vm210, %v197
        %217 = vst.msk [vmem:[%s168 + $0x49] sm:$0xff] %vm210, %v199
        %218 = vst.msk [vmem:[%s168 + $0x51] sm:$0xff] %vm210, %v201
        %v219 = vld [vmem:[%s133] sm:$0xff]
        %v220 = vld [vmem:[%s133 + $0x8] sm:$0xff]
        %v221 = vld [vmem:[%s133 + $0x10] sm:$0xff]
        %v222 = vld [vmem:[%s133 + $0x18] sm:$0xff]
        %v223 = vld [vmem:[%s133 + $0x20] sm:$0xff]
        %v224 = vld [vmem:[%s133 + $0x28] sm:$0xff]
        %v225 = vld [vmem:[%s133 + $0x30] sm:$0xff]
        %v226 = vld [vmem:[%s133 + $0x38] sm:$0xff]
        %235 = vrot.lane.b32.xlu0 %v219, 114
        %v236 = vpop.permute.xlu0 %235
        %237 = vrot.lane.b32.xlu0 %v220, 114
        %v238 = vpop.permute.xlu0 %237
        %239 = vrot.lane.b32.xlu0 %v221, 114
        %v240 = vpop.permute.xlu0 %239
        %241 = vrot.lane.b32.xlu0 %v222, 114
        %v242 = vpop.permute.xlu0 %241
        %243 = vrot.lane.b32.xlu0 %v223, 114
        %v244 = vpop.permute.xlu0 %243
        %245 = vrot.lane.b32.xlu0 %v224, 114
        %v246 = vpop.permute.xlu0 %245
        %247 = vrot.lane.b32.xlu0 %v225, 114
        %v248 = vpop.permute.xlu0 %247
        %249 = vrot.lane.b32.xlu0 %v226, 114
        %v250 = vpop.permute.xlu0 %249
        %vm259 = vcmask 15360
        %260 = vst.msk [vmem:[%s168 + $0x1] sm:$0xff] %vm259, %v236
        %261 = vst.msk [vmem:[%s168 + $0x9] sm:$0xff] %vm259, %v238
        %262 = vst.msk [vmem:[%s168 + $0x19] sm:$0xff] %vm259, %v240
        %263 = vst.msk [vmem:[%s168 + $0x21] sm:$0xff] %vm259, %v242
        %264 = vst.msk [vmem:[%s168 + $0x31] sm:$0xff] %vm259, %v244
        %265 = vst.msk [vmem:[%s168 + $0x39] sm:$0xff] %vm259, %v246
        %266 = vst.msk [vmem:[%s168 + $0x49] sm:$0xff] %vm259, %v248
        %267 = vst.msk [vmem:[%s168 + $0x51] sm:$0xff] %vm259, %v250
        %v268 = vld [vmem:[%s133] sm:$0xff]
        %v269 = vld [vmem:[%s133 + $0x8] sm:$0xff]
        %v270 = vld [vmem:[%s133 + $0x10] sm:$0xff]
        %v271 = vld [vmem:[%s133 + $0x18] sm:$0xff]
        %v272 = vld [vmem:[%s133 + $0x20] sm:$0xff]
        %v273 = vld [vmem:[%s133 + $0x28] sm:$0xff]
        %v274 = vld [vmem:[%s133 + $0x30] sm:$0xff]
        %v275 = vld [vmem:[%s133 + $0x38] sm:$0xff]
        %284 = vrot.lane.b32.xlu0 %v268, 18
        %v285 = vpop.permute.xlu0 %284
        %286 = vrot.lane.b32.xlu0 %v269, 18
        %v287 = vpop.permute.xlu0 %286
        %288 = vrot.lane.b32.xlu0 %v270, 18
        %v289 = vpop.permute.xlu0 %288
        %290 = vrot.lane.b32.xlu0 %v271, 18
        %v291 = vpop.permute.xlu0 %290
        %292 = vrot.lane.b32.xlu0 %v272, 18
        %v293 = vpop.permute.xlu0 %292
        %294 = vrot.lane.b32.xlu0 %v273, 18
        %v295 = vpop.permute.xlu0 %294
        %296 = vrot.lane.b32.xlu0 %v274, 18
        %v297 = vpop.permute.xlu0 %296
        %298 = vrot.lane.b32.xlu0 %v275, 18
        %v299 = vpop.permute.xlu0 %298
        %vm308 = vcmask 171152
        %309 = vst.msk [vmem:[%s168 + $0x1] sm:$0xff] %vm308, %v285
        %310 = vst.msk [vmem:[%s168 + $0x9] sm:$0xff] %vm308, %v287
        %311 = vst.msk [vmem:[%s168 + $0x19] sm:$0xff] %vm308, %v289
        %312 = vst.msk [vmem:[%s168 + $0x21] sm:$0xff] %vm308, %v291
        %313 = vst.msk [vmem:[%s168 + $0x31] sm:$0xff] %vm308, %v293
        %314 = vst.msk [vmem:[%s168 + $0x39] sm:$0xff] %vm308, %v295
        %315 = vst.msk [vmem:[%s168 + $0x49] sm:$0xff] %vm308, %v297
        %316 = vst.msk [vmem:[%s168 + $0x51] sm:$0xff] %vm308, %v299
        %v317 = vld [vmem:[%s133 + $0xf] sm:$0x1]
        %v318 = vld [vmem:[%s133 + $0x1f] sm:$0x1]
        %v319 = vld [vmem:[%s133 + $0x2f] sm:$0x1]
        %v320 = vld [vmem:[%s133 + $0x3f] sm:$0x1]
        %325 = vrot.lane.b32.xlu0 %v317, 2
        %v326 = vpop.permute.xlu0 %325
        %327 = vrot.lane.b32.xlu0 %v318, 2
        %v328 = vpop.permute.xlu0 %327
        %329 = vrot.lane.b32.xlu0 %v319, 2
        %v330 = vpop.permute.xlu0 %329
        %331 = vrot.lane.b32.xlu0 %v320, 2
        %v332 = vpop.permute.xlu0 %331
        %vm337 = vcmask 139280
        %338 = vst.msk [vmem:[%s168] sm:$0x1] %vm337, %v326
        %339 = vst.msk [vmem:[%s168 + $0x18] sm:$0x1] %vm337, %v328
        %340 = vst.msk [vmem:[%s168 + $0x30] sm:$0x1] %vm337, %v330
        %341 = vst.msk [vmem:[%s168 + $0x48] sm:$0x1] %vm337, %v332
        %v342 = vld [vmem:[%s133 + $0xf] sm:$0x1]
        %v343 = vld [vmem:[%s133 + $0x1f] sm:$0x1]
        %v344 = vld [vmem:[%s133 + $0x2f] sm:$0x1]
        %v345 = vld [vmem:[%s133 + $0x3f] sm:$0x1]
        %350 = vrot.lane.b32.xlu0 %v342, 114
        %v351 = vpop.permute.xlu0 %350
        %352 = vrot.lane.b32.xlu0 %v343, 114
        %v353 = vpop.permute.xlu0 %352
        %354 = vrot.lane.b32.xlu0 %v344, 114
        %v355 = vpop.permute.xlu0 %354
        %356 = vrot.lane.b32.xlu0 %v345, 114
        %v357 = vpop.permute.xlu0 %356
        %vm362 = vcmask 8192
        %363 = vst.msk [vmem:[%s168] sm:$0x1] %vm362, %v351
        %364 = vst.msk [vmem:[%s168 + $0x18] sm:$0x1] %vm362, %v353
        %365 = vst.msk [vmem:[%s168 + $0x30] sm:$0x1] %vm362, %v355
        %366 = vst.msk [vmem:[%s168 + $0x48] sm:$0x1] %vm362, %v357
        %v367 = vld [vmem:[%s133 + $0xf] sm:$0x1]
        %v368 = vld [vmem:[%s133 + $0x1f] sm:$0x1]
        %v369 = vld [vmem:[%s133 + $0x2f] sm:$0x1]
        %v370 = vld [vmem:[%s133 + $0x3f] sm:$0x1]
        %375 = vrot.lane.b32.xlu0 %v367, 18
        %v376 = vpop.permute.xlu0 %375
        %377 = vrot.lane.b32.xlu0 %v368, 18
        %v378 = vpop.permute.xlu0 %377
        %379 = vrot.lane.b32.xlu0 %v369, 18
        %v380 = vpop.permute.xlu0 %379
        %381 = vrot.lane.b32.xlu0 %v370, 18
        %v382 = vpop.permute.xlu0 %381
        %vm387 = vcmask 163984
        %388 = vst.msk [vmem:[%s168] sm:$0x1] %vm387, %v376
        %389 = vst.msk [vmem:[%s168 + $0x18] sm:$0x1] %vm387, %v378
        %390 = vst.msk [vmem:[%s168 + $0x30] sm:$0x1] %vm387, %v380
        %391 = vst.msk [vmem:[%s168 + $0x48] sm:$0x1] %vm387, %v382
        %v392 = vld [vmem:[%s133] sm:$0x3]
        %v393 = vld [vmem:[%s133 + $0x10] sm:$0x3]
        %v394 = vld [vmem:[%s133 + $0x20] sm:$0x3]
        %v395 = vld [vmem:[%s133 + $0x30] sm:$0x3]
        %400 = vrot.lane.b32.xlu0 %v392, 2
        %v401 = vpop.permute.xlu0 %400
        %402 = vrot.lane.b32.xlu0 %v393, 2
        %v403 = vpop.permute.xlu0 %402
        %404 = vrot.lane.b32.xlu0 %v394, 2
        %v405 = vpop.permute.xlu0 %404
        %406 = vrot.lane.b32.xlu0 %v395, 2
        %v407 = vpop.permute.xlu0 %406
        %vm412 = vcmask 140304
        %413 = vst.msk [vmem:[%s168 + $0x11] sm:$0x3] %vm412, %v401
        %414 = vst.msk [vmem:[%s168 + $0x29] sm:$0x3] %vm412, %v403
        %415 = vst.msk [vmem:[%s168 + $0x41] sm:$0x3] %vm412, %v405
        %416 = vst.msk [vmem:[%s168 + $0x59] sm:$0x3] %vm412, %v407
        %v417 = vld [vmem:[%s133] sm:$0x3]
        %v418 = vld [vmem:[%s133 + $0x10] sm:$0x3]
        %v419 = vld [vmem:[%s133 + $0x20] sm:$0x3]
        %v420 = vld [vmem:[%s133 + $0x30] sm:$0x3]
        %425 = vrot.lane.b32.xlu0 %v417, 114
        %v426 = vpop.permute.xlu0 %425
        %427 = vrot.lane.b32.xlu0 %v418, 114
        %v428 = vpop.permute.xlu0 %427
        %429 = vrot.lane.b32.xlu0 %v419, 114
        %v430 = vpop.permute.xlu0 %429
        %431 = vrot.lane.b32.xlu0 %v420, 114
        %v432 = vpop.permute.xlu0 %431
        %vm437 = vcmask 9216
        %438 = vst.msk [vmem:[%s168 + $0x11] sm:$0x3] %vm437, %v426
        %439 = vst.msk [vmem:[%s168 + $0x29] sm:$0x3] %vm437, %v428
        %440 = vst.msk [vmem:[%s168 + $0x41] sm:$0x3] %vm437, %v430
        %441 = vst.msk [vmem:[%s168 + $0x59] sm:$0x3] %vm437, %v432
        %v442 = vld [vmem:[%s133] sm:$0x3]
        %v443 = vld [vmem:[%s133 + $0x10] sm:$0x3]
        %v444 = vld [vmem:[%s133 + $0x20] sm:$0x3]
        %v445 = vld [vmem:[%s133 + $0x30] sm:$0x3]
        %450 = vrot.lane.b32.xlu0 %v442, 18
        %v451 = vpop.permute.xlu0 %450
        %452 = vrot.lane.b32.xlu0 %v443, 18
        %v453 = vpop.permute.xlu0 %452
        %454 = vrot.lane.b32.xlu0 %v444, 18
        %v455 = vpop.permute.xlu0 %454
        %456 = vrot.lane.b32.xlu0 %v445, 18
        %v457 = vpop.permute.xlu0 %456
        %vm462 = vcmask 165008
        %463 = vst.msk [vmem:[%s168 + $0x11] sm:$0x3] %vm462, %v451
        %464 = vst.msk [vmem:[%s168 + $0x29] sm:$0x3] %vm462, %v453
        %465 = vst.msk [vmem:[%s168 + $0x41] sm:$0x3] %vm462, %v455
        %466 = vst.msk [vmem:[%s168 + $0x59] sm:$0x3] %vm462, %v457
        %s467 = smul.u32 4, %s20
        %p468 = scmp.lt.s32.totalorder %s19, 1
        %s469 = scalar_select %p468, %s19, 1
        %p470 = scmp.lt.s32.totalorder %s467, 3
        %s471 = scalar_select %p470, %s467, 3
        %s472 = smul.addr %s471, 3
        %s473 = smul.addr %s469, 12
        %s474 = sadd.s32 %s472, %s473
        %s475 = smul.addr %s474, 8
        %s476 = scalar_lea.vmem %s1, %s475
        // Predicated region
        $region29: #{tpu_custom_call.1} parent=23 // pred_check
          %p477 = pneg %p75
        $region30: #{tpu_custom_call.1} parent=23 // pred_check_branch
          %479 = sbr.rel (%p477) target = $region32
        $region31: #{tpu_custom_call.1} parent=23 // pred_region
          %s480 = smul.u32 4, %s20
        $region32: #{tpu_custom_call.1} parent=23 // pred_fallthru
          _
      $region24: #{tpu_custom_call.1} parent=5 // pred_fallthru
        _
      %p481 = scmp.le.s32.totalorder 2, %s10
      // Predicated region
      $region33: #{tpu_custom_call.1} parent=5 // pred_check
        %p482 = pneg %p481
      $region34: #{tpu_custom_call.1} parent=5 // pred_check_branch
        %484 = sbr.rel (%p482) target = $region36
      $region35: #{tpu_custom_call.1} parent=5 // pred_region
        %s485 = ssub.s32 %s10, 2
        // Predicated region
        $region37: #{tpu_custom_call.1} parent=35 // pred_check
          %p486 = pneg %p81
        $region38: #{tpu_custom_call.1} parent=35 // pred_check_branch
          %488 = sbr.rel (%p486) target = $region40
        $region39: #{tpu_custom_call.1} parent=35 // pred_region
          %s489 = smul.u32 4, %s22
          %p490 = scmp.lt.s32.totalorder %s21, 1
          %s491 = scalar_select %p490, %s21, 1
          %p492 = scmp.lt.s32.totalorder %s489, 3
          %s493 = scalar_select %p492, %s489, 3
          %s494 = smul.addr %s493, 3
          %s495 = smul.addr %s491, 12
          %s496 = sadd.s32 %s494, %s495
          %s497 = smul.addr %s496, 8
          %s498 = scalar_lea.vmem %s1, %s497
        $region40: #{tpu_custom_call.1} parent=35 // pred_fallthru
          _
      $region36: #{tpu_custom_call.1} parent=5 // pred_fallthru
        _
    $region6: #{tpu_custom_call.1} parent=1 // loop_footer
      %s14 = sadd.s32 1, %s10
    $region7: #{tpu_custom_call.1} parent=1 // loop_footer_branch
      %9 = sbr.rel target = $region3
    $region8: #{tpu_custom_call.1} parent=1 // loop_exit
      _
    %499 = vsyncpa [#allocation3], 1
    %s500 = scalar_lea.sflag [#allocation3], 1
    %501 = vsyncpa %s500, 1

</llo_original>
